<compile_context>
chip_gen: v7x
topology: tpu7x:2x2x1
jax: 0.10.0
libtpu: 0.0.40
codegen_flags: <defaults>
</compile_context>

<pallas_src>
import jax
import jax.numpy as jnp
from jax.experimental import pallas as pl
from jax.experimental.pallas import tpu as pltpu


# ----------------------------------------------------------------------------
# Kernel factory (hard_labels selects 1-log vs faithful 2-log BCE at trace time)
# ----------------------------------------------------------------------------
def _make_loss_kernel(hard_labels: bool):
    def kernel(psh_ref, pst_ref, gsh_ref, gst_ref, msub_ref,
               poh_ref, pot_ref, goh_ref, got_ref, mrep_ref, out_ref):
        def bce(p_ref, y_ref):
            p = p_ref[...].astype(jnp.float32)
            y = y_ref[...].astype(jnp.float32)
            if hard_labels:
                # golds are exactly 0/1 -> one EUP log per element
                return -jnp.maximum(jnp.log(jnp.where(y > 0.5, p, 1.0 - p)), -100.0)
            # faithful torch.nn.functional.binary_cross_entropy (log clamp at -100)
            log_p = jnp.maximum(jnp.log(p), -100.0)
            log_q = jnp.maximum(jnp.log(1.0 - p), -100.0)
            return -(y * log_p + (1.0 - y) * log_q)

        def block_sum(x):  # (1, bb, W) -> (1, 1, 1), two-stage keepdims reduce
            return jnp.sum(jnp.sum(x, axis=-1, keepdims=True), axis=1, keepdims=True)

        # subject heads/tails: (1, bb, S), lane-dense in S
        sub_w = msub_ref[...].astype(jnp.float32) * (
            bce(psh_ref, gsh_ref) + bce(pst_ref, gst_ref))
        # object heads/tails: (1, bb, S*R), lane-dense; mask pre-replicated over R
        obj_w = mrep_ref[...].astype(jnp.float32) * (
            bce(poh_ref, goh_ref) + bce(pot_ref, got_ref))

        out_ref[...] = block_sum(sub_w) + block_sum(obj_w)

    return kernel


# ----------------------------------------------------------------------------
# Helpers
# ----------------------------------------------------------------------------
def _round_up(x, m):
    return (x + m - 1) // m * m


def _largest_divisor_leq(n, m):
    m = max(1, min(int(m), int(n)))
    for d in range(m, 0, -1):
        if n % d == 0:
            return d
    return 1


# ----------------------------------------------------------------------------
# Wrapper: layout plumbing + pallas_call + tiny epilogue
# ----------------------------------------------------------------------------
def my_loss_pallas(predict_label, gold_label, mask, *, block_b=None,
                   hard_labels=True,
                   block_budget_bytes=12 * 1024 * 1024,   # per-buffer; x2 double-buffered
                   vmem_limit_bytes=40 * 1024 * 1024):    # safe on v7x's 64 MiB VMEM
    psh = predict_label["pred_sub_heads"]   # (B, S, 1)
    pst = predict_label["pred_sub_tails"]   # (B, S, 1)
    poh = predict_label["pred_obj_heads"]   # (B, S, R)
    pot = predict_label["pred_obj_tails"]   # (B, S, R)
    gsh = gold_label["sub_heads"]           # (B, S)
    gst = gold_label["sub_tails"]           # (B, S)
    goh = gold_label["obj_heads"]           # (B, S, R)
    got = gold_label["obj_tails"]           # (B, S, R)

    B, S = gsh.shape
    R = poh.shape[-1]

    # Per-position mask replicated over relations, as a narrow int8 stream: the
    # cheap, shape-robust way to apply the (B,S,1) mask broadcast to the
    # lane-dense flat (B, S*R) layout (flat index j -> mask[b, j // R]).
    mask_rep = jnp.repeat(mask.astype(jnp.int8), R, axis=-1)            # (B, S*R)

    # ----------------------------- block size (divisor of B -> no padding ever)
    lane_s = _round_up(S, 128)
    lane_sr = _round_up(S * R, 128)
    bytes_per_row = (
        lane_s * (psh.dtype.itemsize + pst.dtype.itemsize + gsh.dtype.itemsize
                  + gst.dtype.itemsize + mask.dtype.itemsize)
        + lane_sr * (poh.dtype.itemsize + pot.dtype.itemsize
                     + goh.dtype.itemsize + got.dtype.itemsize + 1))     # +1: int8 mask_rep
    max_rows = max(1, int(block_budget_bytes) // max(bytes_per_row, 1))
    if block_b is None:
        block_b = B if B <= max_rows else _largest_divisor_leq(B, max_rows)
    else:
        block_b = _largest_divisor_leq(B, block_b)
    nb = B // block_b

    # Free, contiguous reshapes: the blocked batch axis becomes a LEADING dim,
    # so each BlockSpec's last two dims equal the full array dims (always legal
    # regardless of block_b alignment or dtype packing).
    def as_blocks(x, w):
        return x.reshape(nb, block_b, w)

    psh3, pst3 = as_blocks(psh, S), as_blocks(pst, S)
    gsh3, gst3 = as_blocks(gsh, S), as_blocks(gst, S)
    msub3 = as_blocks(mask, S)
    poh3, pot3 = as_blocks(poh, S * R), as_blocks(pot, S * R)
    goh3, got3 = as_blocks(goh, S * R), as_blocks(got, S * R)
    mrep3 = as_blocks(mask_rep, S * R)

    sub_spec = pl.BlockSpec((1, block_b, S), lambda b: (b, 0, 0))
    obj_spec = pl.BlockSpec((1, block_b, S * R), lambda b: (b, 0, 0))

    grid_spec = pltpu.PrefetchScalarGridSpec(
        num_scalar_prefetch=0,
        grid=(nb,),
        in_specs=[sub_spec] * 5 + [obj_spec] * 5,
        out_specs=pl.BlockSpec((1, 1, 1), lambda b: (b, 0, 0)),
    )

    partials = pl.pallas_call(
        _make_loss_kernel(hard_labels),
        out_shape=jax.ShapeDtypeStruct((nb, 1, 1), jnp.float32),
        grid_spec=grid_spec,
        compiler_params=pltpu.CompilerParams(
            # each block writes its own output slice -> truly parallel (megacore on v7x)
            dimension_semantics=("parallel",),
            vmem_limit_bytes=int(vmem_limit_bytes),
        ),
    )(psh3, pst3, gsh3, gst3, msub3, poh3, pot3, goh3, got3, mrep3)

    num = jnp.sum(partials)
    den = jnp.sum(mask.astype(jnp.float32))   # shared denominator of all four terms
    return num / den                          # NaN if sum(mask)==0 (same as PyTorch)


# ----------------------------------------------------------------------------
# Pure-JAX reference (mirrors the PyTorch MyLoss exactly, two-log BCE)
# ----------------------------------------------------------------------------
def my_loss_ref(predict_label, gold_label, mask):
    mask = mask.astype(jnp.float32)

    def bce(p, y):
        log_p = jnp.maximum(jnp.log(p), -100.0)
        log_q = jnp.maximum(jnp.log(1.0 - p), -100.0)
        return -(y * log_p + (1.0 - y) * log_q)

    def loss_fn(p, y):
        if p.ndim == y.ndim + 1 and p.shape[-1] == 1:
            p = p[..., 0]                      # torch .squeeze(-1)
        l = bce(p.astype(jnp.float32), y.astype(jnp.float32))
        if mask.shape == l.shape:
            return jnp.sum(mask * l) / jnp.sum(mask)
        m2 = mask[..., None]
        return jnp.sum(m2 * l) / jnp.sum(m2)

    return (loss_fn(predict_label["pred_sub_heads"], gold_label["sub_heads"])
            + loss_fn(predict_label["pred_sub_tails"], gold_label["sub_tails"])
            + loss_fn(predict_label["pred_obj_heads"], gold_label["obj_heads"])
            + loss_fn(predict_label["pred_obj_tails"], gold_label["obj_tails"]))


if __name__ == "__main__":
    B, S, R = 8, 16, 6
    key = jax.random.PRNGKey(0)
    ks = jax.random.split(key, 8)

    predict_label = {
        "pred_sub_heads": jax.nn.sigmoid(jax.random.normal(ks[0], (B, S, 1), jnp.float32)),
        "pred_sub_tails": jax.nn.sigmoid(jax.random.normal(ks[1], (B, S, 1), jnp.float32)),
        "pred_obj_heads": jax.nn.sigmoid(jax.random.normal(ks[2], (B, S, R), jnp.float32)),
        "pred_obj_tails": jax.nn.sigmoid(jax.random.normal(ks[3], (B, S, R), jnp.float32)),
    }
    gold_label = {
        "sub_heads": (jax.random.uniform(ks[4], (B, S)) < 0.2).astype(jnp.float32),
        "sub_tails": (jax.random.uniform(ks[5], (B, S)) < 0.2).astype(jnp.float32),
        "obj_heads": (jax.random.uniform(ks[6], (B, S, R)) < 0.1).astype(jnp.float32),
        "obj_tails": (jax.random.uniform(ks[7], (B, S, R)) < 0.1).astype(jnp.float32),
    }
    # sentence mask: last 3 positions of every sequence are padding
    mask = jnp.concatenate(
        [jnp.ones((B, S - 3), jnp.float32), jnp.zeros((B, 3), jnp.float32)], axis=1)

    ref = my_loss_ref(predict_label, gold_label, mask)

    # multi-block path: block_b=4 -> grid of 2 parallel steps
    loss_a = jax.block_until_ready(
        my_loss_pallas(predict_label, gold_label, mask, block_b=4))
    # heuristic path: whole batch in one block
    loss_b = jax.block_until_ready(
        my_loss_pallas(predict_label, gold_label, mask))

    assert loss_a.dtype == jnp.float32 and loss_b.dtype == jnp.float32
    assert jnp.allclose(loss_a, ref, atol=1e-5, rtol=1e-5), (float(loss_a), float(ref))
    assert jnp.allclose(loss_b, ref, atol=1e-5, rtol=1e-5), (float(loss_b), float(ref))

    print("KERNEL_OK")
</pallas_src>

<mosaic_0001>
module attributes {stable_mosaic.version = 11 : i64} {
  func.func @kernel(%arg0: i32, %arg1: memref<1x4x16xf32, #tpu.memory_space<vmem>>, %arg2: memref<1x4x16xf32, #tpu.memory_space<vmem>>, %arg3: memref<1x4x16xf32, #tpu.memory_space<vmem>>, %arg4: memref<1x4x16xf32, #tpu.memory_space<vmem>>, %arg5: memref<1x4x16xf32, #tpu.memory_space<vmem>>, %arg6: memref<1x4x96xf32, #tpu.memory_space<vmem>>, %arg7: memref<1x4x96xf32, #tpu.memory_space<vmem>>, %arg8: memref<1x4x96xf32, #tpu.memory_space<vmem>>, %arg9: memref<1x4x96xf32, #tpu.memory_space<vmem>>, %arg10: memref<1x4x96xi8, #tpu.memory_space<vmem>>, %arg11: memref<1x1x1xf32, #tpu.memory_space<vmem>>) attributes {dimension_semantics = [#tpu.dimension_semantics<parallel>], iteration_bounds = array<i64: 2>, scalar_prefetch = 0 : i64, scratch_operands = 0 : i64, tpu.core_type = #tpu.core_type<tc>, window_params = [{transform_indices = @transform_0, window_bounds = array<i64: 1, 4, 16>}, {transform_indices = @transform_1, window_bounds = array<i64: 1, 4, 16>}, {transform_indices = @transform_2, window_bounds = array<i64: 1, 4, 16>}, {transform_indices = @transform_3, window_bounds = array<i64: 1, 4, 16>}, {transform_indices = @transform_4, window_bounds = array<i64: 1, 4, 16>}, {transform_indices = @transform_5, window_bounds = array<i64: 1, 4, 96>}, {transform_indices = @transform_6, window_bounds = array<i64: 1, 4, 96>}, {transform_indices = @transform_7, window_bounds = array<i64: 1, 4, 96>}, {transform_indices = @transform_8, window_bounds = array<i64: 1, 4, 96>}, {transform_indices = @transform_9, window_bounds = array<i64: 1, 4, 96>}, {transform_indices = @transform_10, window_bounds = array<i64: 1, 1, 1>}]} {
    %c0 = arith.constant 0 : index
    %c0_0 = arith.constant 0 : index
    %c0_1 = arith.constant 0 : index
    %0 = vector.load %arg5[%c0, %c0_0, %c0_1] : memref<1x4x16xf32, #tpu.memory_space<vmem>>, vector<1x4x16xf32>
    %c0_2 = arith.constant 0 : index
    %c0_3 = arith.constant 0 : index
    %c0_4 = arith.constant 0 : index
    %1 = vector.load %arg1[%c0_2, %c0_3, %c0_4] : memref<1x4x16xf32, #tpu.memory_space<vmem>>, vector<1x4x16xf32>
    %c0_5 = arith.constant 0 : index
    %c0_6 = arith.constant 0 : index
    %c0_7 = arith.constant 0 : index
    %2 = vector.load %arg3[%c0_5, %c0_6, %c0_7] : memref<1x4x16xf32, #tpu.memory_space<vmem>>, vector<1x4x16xf32>
    %cst = arith.constant 5.000000e-01 : f32
    %3 = vector.broadcast %cst : f32 to vector<1x4x16xf32>
    %4 = arith.cmpf ogt, %2, %3 : vector<1x4x16xf32>
    %cst_8 = arith.constant 1.000000e+00 : f32
    %5 = vector.broadcast %cst_8 : f32 to vector<1x4x16xf32>
    %6 = arith.subf %5, %1 : vector<1x4x16xf32>
    %7 = arith.select %4, %1, %6 : vector<1x4x16xi1>, vector<1x4x16xf32>
    %8 = math.log %7 : vector<1x4x16xf32>
    %cst_9 = arith.constant -1.000000e+02 : f32
    %9 = vector.broadcast %cst_9 : f32 to vector<1x4x16xf32>
    %10 = arith.maximumf %8, %9 : vector<1x4x16xf32>
    %cst_10 = arith.constant 0.000000e+00 : f32
    %11 = vector.broadcast %cst_10 : f32 to vector<1x4x16xf32>
    %12 = arith.subf %11, %10 : vector<1x4x16xf32>
    %c0_11 = arith.constant 0 : index
    %c0_12 = arith.constant 0 : index
    %c0_13 = arith.constant 0 : index
    %13 = vector.load %arg2[%c0_11, %c0_12, %c0_13] : memref<1x4x16xf32, #tpu.memory_space<vmem>>, vector<1x4x16xf32>
    %c0_14 = arith.constant 0 : index
    %c0_15 = arith.constant 0 : index
    %c0_16 = arith.constant 0 : index
    %14 = vector.load %arg4[%c0_14, %c0_15, %c0_16] : memref<1x4x16xf32, #tpu.memory_space<vmem>>, vector<1x4x16xf32>
    %cst_17 = arith.constant 5.000000e-01 : f32
    %15 = vector.broadcast %cst_17 : f32 to vector<1x4x16xf32>
    %16 = arith.cmpf ogt, %14, %15 : vector<1x4x16xf32>
    %cst_18 = arith.constant 1.000000e+00 : f32
    %17 = vector.broadcast %cst_18 : f32 to vector<1x4x16xf32>
    %18 = arith.subf %17, %13 : vector<1x4x16xf32>
    %19 = arith.select %16, %13, %18 : vector<1x4x16xi1>, vector<1x4x16xf32>
    %20 = math.log %19 : vector<1x4x16xf32>
    %cst_19 = arith.constant -1.000000e+02 : f32
    %21 = vector.broadcast %cst_19 : f32 to vector<1x4x16xf32>
    %22 = arith.maximumf %20, %21 : vector<1x4x16xf32>
    %cst_20 = arith.constant 0.000000e+00 : f32
    %23 = vector.broadcast %cst_20 : f32 to vector<1x4x16xf32>
    %24 = arith.subf %23, %22 : vector<1x4x16xf32>
    %25 = arith.addf %12, %24 : vector<1x4x16xf32>
    %26 = arith.mulf %0, %25 : vector<1x4x16xf32>
    %c0_21 = arith.constant 0 : index
    %c0_22 = arith.constant 0 : index
    %c0_23 = arith.constant 0 : index
    %27 = vector.load %arg10[%c0_21, %c0_22, %c0_23] : memref<1x4x96xi8, #tpu.memory_space<vmem>>, vector<1x4x96xi8>
    %28 = arith.sitofp %27 : vector<1x4x96xi8> to vector<1x4x96xf32>
    %c0_24 = arith.constant 0 : index
    %c0_25 = arith.constant 0 : index
    %c0_26 = arith.constant 0 : index
    %29 = vector.load %arg6[%c0_24, %c0_25, %c0_26] : memref<1x4x96xf32, #tpu.memory_space<vmem>>, vector<1x4x96xf32>
    %c0_27 = arith.constant 0 : index
    %c0_28 = arith.constant 0 : index
    %c0_29 = arith.constant 0 : index
    %30 = vector.load %arg8[%c0_27, %c0_28, %c0_29] : memref<1x4x96xf32, #tpu.memory_space<vmem>>, vector<1x4x96xf32>
    %cst_30 = arith.constant 5.000000e-01 : f32
    %31 = vector.broadcast %cst_30 : f32 to vector<1x4x96xf32>
    %32 = arith.cmpf ogt, %30, %31 : vector<1x4x96xf32>
    %cst_31 = arith.constant 1.000000e+00 : f32
    %33 = vector.broadcast %cst_31 : f32 to vector<1x4x96xf32>
    %34 = arith.subf %33, %29 : vector<1x4x96xf32>
    %35 = arith.select %32, %29, %34 : vector<1x4x96xi1>, vector<1x4x96xf32>
    %36 = math.log %35 : vector<1x4x96xf32>
    %cst_32 = arith.constant -1.000000e+02 : f32
    %37 = vector.broadcast %cst_32 : f32 to vector<1x4x96xf32>
    %38 = arith.maximumf %36, %37 : vector<1x4x96xf32>
    %cst_33 = arith.constant 0.000000e+00 : f32
    %39 = vector.broadcast %cst_33 : f32 to vector<1x4x96xf32>
    %40 = arith.subf %39, %38 : vector<1x4x96xf32>
    %c0_34 = arith.constant 0 : index
    %c0_35 = arith.constant 0 : index
    %c0_36 = arith.constant 0 : index
    %41 = vector.load %arg7[%c0_34, %c0_35, %c0_36] : memref<1x4x96xf32, #tpu.memory_space<vmem>>, vector<1x4x96xf32>
    %c0_37 = arith.constant 0 : index
    %c0_38 = arith.constant 0 : index
    %c0_39 = arith.constant 0 : index
    %42 = vector.load %arg9[%c0_37, %c0_38, %c0_39] : memref<1x4x96xf32, #tpu.memory_space<vmem>>, vector<1x4x96xf32>
    %cst_40 = arith.constant 5.000000e-01 : f32
    %43 = vector.broadcast %cst_40 : f32 to vector<1x4x96xf32>
    %44 = arith.cmpf ogt, %42, %43 : vector<1x4x96xf32>
    %cst_41 = arith.constant 1.000000e+00 : f32
    %45 = vector.broadcast %cst_41 : f32 to vector<1x4x96xf32>
    %46 = arith.subf %45, %41 : vector<1x4x96xf32>
    %47 = arith.select %44, %41, %46 : vector<1x4x96xi1>, vector<1x4x96xf32>
    %48 = math.log %47 : vector<1x4x96xf32>
    %cst_42 = arith.constant -1.000000e+02 : f32
    %49 = vector.broadcast %cst_42 : f32 to vector<1x4x96xf32>
    %50 = arith.maximumf %48, %49 : vector<1x4x96xf32>
    %cst_43 = arith.constant 0.000000e+00 : f32
    %51 = vector.broadcast %cst_43 : f32 to vector<1x4x96xf32>
    %52 = arith.subf %51, %50 : vector<1x4x96xf32>
    %53 = arith.addf %40, %52 : vector<1x4x96xf32>
    %54 = arith.mulf %28, %53 : vector<1x4x96xf32>
    %cst_44 = arith.constant dense<0.000000e+00> : vector<1x4xf32>
    %55 = vector.multi_reduction <add>, %26, %cst_44 [2] : vector<1x4x16xf32> to vector<1x4xf32>
    %56 = vector.shape_cast %55 : vector<1x4xf32> to vector<1x4x1xf32>
    %cst_45 = arith.constant dense<0.000000e+00> : vector<1x1xf32>
    %57 = vector.multi_reduction <add>, %56, %cst_45 [1] : vector<1x4x1xf32> to vector<1x1xf32>
    %58 = vector.shape_cast %57 : vector<1x1xf32> to vector<1x1x1xf32>
    %cst_46 = arith.constant dense<0.000000e+00> : vector<1x4xf32>
    %59 = vector.multi_reduction <add>, %54, %cst_46 [2] : vector<1x4x96xf32> to vector<1x4xf32>
    %60 = vector.shape_cast %59 : vector<1x4xf32> to vector<1x4x1xf32>
    %cst_47 = arith.constant dense<0.000000e+00> : vector<1x1xf32>
    %61 = vector.multi_reduction <add>, %60, %cst_47 [1] : vector<1x4x1xf32> to vector<1x1xf32>
    %62 = vector.shape_cast %61 : vector<1x1xf32> to vector<1x1x1xf32>
    %63 = arith.addf %58, %62 : vector<1x1x1xf32>
    %c0_48 = arith.constant 0 : index
    %c0_49 = arith.constant 0 : index
    %c0_50 = arith.constant 0 : index
    %64 = vector.load %arg11[%c0_48, %c0_49, %c0_50] : memref<1x1x1xf32, #tpu.memory_space<vmem>>, vector<1x1x1xf32>
    tpu.vector_store %arg11[%c0_48, %c0_49, %c0_50], %63 {strides = array<i32>} : memref<1x1x1xf32, #tpu.memory_space<vmem>>, vector<1x1x1xf32>,
    return
  }
  func.func @transform_0(%arg0: i32) -> (i32, i32, i32) {
    %c0_i32 = arith.constant 0 : i32
    %c0_i32_0 = arith.constant 0 : i32
    %c0_i32_1 = arith.constant 0 : i32
    return %arg0, %c0_i32, %c0_i32_0 : i32, i32, i32
  }
  func.func @transform_1(%arg0: i32) -> (i32, i32, i32) {
    %c0_i32 = arith.constant 0 : i32
    %c0_i32_0 = arith.constant 0 : i32
    %c0_i32_1 = arith.constant 0 : i32
    return %arg0, %c0_i32, %c0_i32_0 : i32, i32, i32
  }
  func.func @transform_2(%arg0: i32) -> (i32, i32, i32) {
    %c0_i32 = arith.constant 0 : i32
    %c0_i32_0 = arith.constant 0 : i32
    %c0_i32_1 = arith.constant 0 : i32
    return %arg0, %c0_i32, %c0_i32_0 : i32, i32, i32
  }
  func.func @transform_3(%arg0: i32) -> (i32, i32, i32) {
    %c0_i32 = arith.constant 0 : i32
    %c0_i32_0 = arith.constant 0 : i32
    %c0_i32_1 = arith.constant 0 : i32
    return %arg0, %c0_i32, %c0_i32_0 : i32, i32, i32
  }
  func.func @transform_4(%arg0: i32) -> (i32, i32, i32) {
    %c0_i32 = arith.constant 0 : i32
    %c0_i32_0 = arith.constant 0 : i32
    %c0_i32_1 = arith.constant 0 : i32
    return %arg0, %c0_i32, %c0_i32_0 : i32, i32, i32
  }
  func.func @transform_5(%arg0: i32) -> (i32, i32, i32) {
    %c0_i32 = arith.constant 0 : i32
    %c0_i32_0 = arith.constant 0 : i32
    %c0_i32_1 = arith.constant 0 : i32
    return %arg0, %c0_i32, %c0_i32_0 : i32, i32, i32
  }
  func.func @transform_6(%arg0: i32) -> (i32, i32, i32) {
    %c0_i32 = arith.constant 0 : i32
    %c0_i32_0 = arith.constant 0 : i32
    %c0_i32_1 = arith.constant 0 : i32
    return %arg0, %c0_i32, %c0_i32_0 : i32, i32, i32
  }
  func.func @transform_7(%arg0: i32) -> (i32, i32, i32) {
    %c0_i32 = arith.constant 0 : i32
    %c0_i32_0 = arith.constant 0 : i32
    %c0_i32_1 = arith.constant 0 : i32
    return %arg0, %c0_i32, %c0_i32_0 : i32, i32, i32
  }
  func.func @transform_8(%arg0: i32) -> (i32, i32, i32) {
    %c0_i32 = arith.constant 0 : i32
    %c0_i32_0 = arith.constant 0 : i32
    %c0_i32_1 = arith.constant 0 : i32
    return %arg0, %c0_i32, %c0_i32_0 : i32, i32, i32
  }
  func.func @transform_9(%arg0: i32) -> (i32, i32, i32) {
    %c0_i32 = arith.constant 0 : i32
    %c0_i32_0 = arith.constant 0 : i32
    %c0_i32_1 = arith.constant 0 : i32
    return %arg0, %c0_i32, %c0_i32_0 : i32, i32, i32
  }
  func.func @transform_10(%arg0: i32) -> (i32, i32, i32) {
    %c0_i32 = arith.constant 0 : i32
    %c0_i32_0 = arith.constant 0 : i32
    %c0_i32_1 = arith.constant 0 : i32
    return %arg0, %c0_i32, %c0_i32_0 : i32, i32, i32
  }
}

</mosaic_0001>

<llo_original>
// kernel: tpu_custom_call.1
$region0: #{tpu_custom_call.1}
  #allocation0 [shape = 'u32[]', space=smem, size = 0x4, offset = 0x4, fixed_abs, tag = 'smem constant byte address 0x4 - core index']
  #allocation1 [shape = 'u32[144,128]{1,0:T(1,128)}', space=vmem, size = 0x12000, scoped, tag = 'internal scratch']
  %s0 = inlined_call_operand.hbm [shape: f32[2,4,16], index: 0, kind: input, shape index: {}]
  %s1 = inlined_call_operand.hbm [shape: f32[2,4,16], index: 1, kind: input, shape index: {}]
  %s2 = inlined_call_operand.hbm [shape: f32[2,4,16], index: 2, kind: input, shape index: {}]
  %s3 = inlined_call_operand.vmem [shape: f32[2,4,16], index: 3, kind: input, shape index: {}]
  %s4 = inlined_call_operand.hbm [shape: f32[2,4,16], index: 4, kind: input, shape index: {}]
  %s5 = inlined_call_operand.vmem [shape: f32[2,4,96], index: 5, kind: input, shape index: {}]
  %s6 = inlined_call_operand.hbm [shape: f32[2,4,96], index: 6, kind: input, shape index: {}]
  %s7 = inlined_call_operand.vmem [shape: f32[2,4,96], index: 7, kind: input, shape index: {}]
  %s8 = inlined_call_operand.hbm [shape: f32[2,4,96], index: 8, kind: input, shape index: {}]
  %s9 = inlined_call_operand.vmem [shape: s8[2,4,96], index: 9, kind: input, shape index: {}]
  %s10 = inlined_call_operand.vmem [shape: f32[2,1,1], index: 10, kind: output, shape index: {}]
  %s11 = sld [smem:[#allocation0]]
  $region97: #{tpu_custom_call.1} parent=0
    _
  %s13 = ssub.s32 1, %s11
  %s14 = scalar_select 0, %s13, %s11
  $region1: #{tpu_custom_call.1} parent=0
    #allocation2 [shape = 'u8[4096]{0}', space=vmem, size = 0x1000, scoped, tag = 'input window, operand 0']
    #allocation3 [shape = 's32[2]{0}', space=sflag, size = 0x8, scoped, tag = 'scoped memory for tpu_custom_call.1']
    #allocation4 [shape = 'u8[4096]{0}', space=vmem, size = 0x1000, scoped, tag = 'input window, operand 1']
    #allocation5 [shape = 's32[2]{0}', space=sflag, size = 0x8, scoped, tag = 'scoped memory for tpu_custom_call.1']
    #allocation6 [shape = 'u8[4096]{0}', space=vmem, size = 0x1000, scoped, tag = 'input window, operand 2']
    #allocation7 [shape = 'u8[4096]{0}', space=vmem, size = 0x1000, scoped, tag = 'input window, operand 4']
    #allocation8 [shape = 's32[2]{0}', space=sflag, size = 0x8, scoped, tag = 'scoped memory for tpu_custom_call.1']
    #allocation9 [shape = 'u8[4096]{0}', space=vmem, size = 0x1000, scoped, tag = 'input window, operand 6']
    #allocation10 [shape = 'u8[4096]{0}', space=vmem, size = 0x1000, scoped, tag = 'input window, operand 8']
    #allocation11 [shape = 's32[2]{0}', space=sflag, size = 0x8, scoped, tag = 'scoped memory for tpu_custom_call.1']
    %15 = vsyncpa [#allocation3], 0
    %s16 = scalar_lea.sflag [#allocation3], 1
    %17 = vsyncpa %s16, 0
    %18 = vsyncpa [#allocation5], 0
    %s19 = scalar_lea.sflag [#allocation5], 1
    %20 = vsyncpa %s19, 0
    %21 = vsyncpa [#allocation8], 0
    %s22 = scalar_lea.sflag [#allocation8], 1
    %23 = vsyncpa %s22, 0
    %24 = vsyncpa [#allocation11], 0
    %s25 = scalar_lea.sflag [#allocation11], 1
    %26 = vsyncpa %s25, 0
    loop: start=0, step=1, limit=4
    $region2: #{tpu_custom_call.1} parent=1 // loop_pre_header
      _
    $region3: #{tpu_custom_call.1} parent=1 // loop_header
      %s28 = sphi 0, %s32
      %p29 = scmp.ge.s32.totalorder %s28, 4
      %s38 = sphi 0, %s40
      %s41 = sphi 0, %s38
      %s42 = sphi 0, %s41
      %s58 = sphi 0, %s42
      %s64 = sphi 0, %s66
      %s67 = sphi 0, %s64
      %s68 = sphi 0, %s67
      %s84 = sphi 0, %s68
      %s90 = sphi 0, %s92
      %s93 = sphi 0, %s90
      %s94 = sphi 0, %s93
      %s110 = sphi 0, %s94
      %s116 = sphi 0, %s118
      %s119 = sphi 0, %s116
      %s120 = sphi 0, %s119
      %s136 = sphi 0, %s120
      %s142 = sphi 0, %s144
      %s145 = sphi 0, %s142
      %s146 = sphi 0, %s145
      %s162 = sphi 0, %s146
      %s168 = sphi 0, %s170
      %s171 = sphi 0, %s168
      %s172 = sphi 0, %s171
      %s188 = sphi 0, %s172
      %s194 = sphi 0, %s196
      %s197 = sphi 0, %s194
      %s198 = sphi 0, %s197
      %s214 = sphi 0, %s198
      %s220 = sphi 0, %s222
      %s223 = sphi 0, %s220
      %s224 = sphi 0, %s223
      %s240 = sphi 0, %s224
      %s246 = sphi 0, %s248
      %s249 = sphi 0, %s246
      %s250 = sphi 0, %s249
      %s266 = sphi 0, %s250
      %s272 = sphi 0, %s274
      %s275 = sphi 0, %s272
      %s276 = sphi 0, %s275
      %s292 = sphi 0, %s276
      %s298 = sphi 0, %s300
      %s301 = sphi 0, %s298
      %s302 = sphi 0, %s301
      %s318 = sphi 0, %s302
    $region4: #{tpu_custom_call.1} parent=1 // loop_header_branch
      %31 = sbr.rel (%p29) target = $region8
    $region5: #{tpu_custom_call.1} parent=1 // loop_body
      %s33 = ssub.s32 %s28, 1
      %s34 = ssub.s32 %s28, 2
      %s35 = sadd.s32 %s28, 1
      %s36 = ssub.s32 %s28, %s35
      %p37 = scmp.eq.s32.totalorder %s36, 0
      %s39 = sadd.s32 %s38, 1
      %s40 = scalar_select %p37, %s38, %s39
      %p43 = pneg %p37
      %p44 = scmp.eq.s32.totalorder %s28, 1
      %p45 = por %p43, %p44
      %p46 = scmp.ne.s32.totalorder %s38, %s41
      %p47 = scmp.eq.s32.totalorder %s28, 0
      %p48 = por %p46, %p47
      %p49 = scmp.ne.s32.totalorder %s38, %s41
      %p50 = scmp.eq.s32.totalorder %s33, 1
      %p51 = por %p49, %p50
      %p52 = scmp.ne.s32.totalorder %s41, %s42
      %p53 = scmp.eq.s32.totalorder %s33, 0
      %p54 = por %p52, %p53
      %p55 = scmp.ne.s32.totalorder %s41, %s42
      %p56 = scmp.eq.s32.totalorder %s34, 1
      %p57 = por %p55, %p56
      %p59 = scmp.ne.s32.totalorder %s42, %s58
      %p60 = scmp.eq.s32.totalorder %s34, 0
      %p61 = por %p59, %p60
      %s62 = ssub.s32 %s28, %s35
      %p63 = scmp.eq.s32.totalorder %s62, 0
      %s65 = sadd.s32 %s64, 1
      %s66 = scalar_select %p63, %s64, %s65
      %p69 = pneg %p63
      %p70 = scmp.eq.s32.totalorder %s28, 1
      %p71 = por %p69, %p70
      %p72 = scmp.ne.s32.totalorder %s64, %s67
      %p73 = scmp.eq.s32.totalorder %s28, 0
      %p74 = por %p72, %p73
      %p75 = scmp.ne.s32.totalorder %s64, %s67
      %p76 = scmp.eq.s32.totalorder %s33, 1
      %p77 = por %p75, %p76
      %p78 = scmp.ne.s32.totalorder %s67, %s68
      %p79 = scmp.eq.s32.totalorder %s33, 0
      %p80 = por %p78, %p79
      %p81 = scmp.ne.s32.totalorder %s67, %s68
      %p82 = scmp.eq.s32.totalorder %s34, 1
      %p83 = por %p81, %p82
      %p85 = scmp.ne.s32.totalorder %s68, %s84
      %p86 = scmp.eq.s32.totalorder %s34, 0
      %p87 = por %p85, %p86
      %s88 = ssub.s32 %s28, %s35
      %p89 = scmp.eq.s32.totalorder %s88, 0
      %s91 = sadd.s32 %s90, 1
      %s92 = scalar_select %p89, %s90, %s91
      %p95 = pneg %p89
      %p96 = scmp.eq.s32.totalorder %s28, 1
      %p97 = por %p95, %p96
      %p98 = scmp.ne.s32.totalorder %s90, %s93
      %p99 = scmp.eq.s32.totalorder %s28, 0
      %p100 = por %p98, %p99
      %p101 = scmp.ne.s32.totalorder %s90, %s93
      %p102 = scmp.eq.s32.totalorder %s33, 1
      %p103 = por %p101, %p102
      %p104 = scmp.ne.s32.totalorder %s93, %s94
      %p105 = scmp.eq.s32.totalorder %s33, 0
      %p106 = por %p104, %p105
      %p107 = scmp.ne.s32.totalorder %s93, %s94
      %p108 = scmp.eq.s32.totalorder %s34, 1
      %p109 = por %p107, %p108
      %p111 = scmp.ne.s32.totalorder %s94, %s110
      %p112 = scmp.eq.s32.totalorder %s34, 0
      %p113 = por %p111, %p112
      %s114 = ssub.s32 %s28, %s35
      %p115 = scmp.eq.s32.totalorder %s114, 0
      %s117 = sadd.s32 %s116, 1
      %s118 = scalar_select %p115, %s116, %s117
      %p121 = pneg %p115
      %p122 = scmp.eq.s32.totalorder %s28, 1
      %p123 = por %p121, %p122
      %p124 = scmp.ne.s32.totalorder %s116, %s119
      %p125 = scmp.eq.s32.totalorder %s28, 0
      %p126 = por %p124, %p125
      %p127 = scmp.ne.s32.totalorder %s116, %s119
      %p128 = scmp.eq.s32.totalorder %s33, 1
      %p129 = por %p127, %p128
      %p130 = scmp.ne.s32.totalorder %s119, %s120
      %p131 = scmp.eq.s32.totalorder %s33, 0
      %p132 = por %p130, %p131
      %p133 = scmp.ne.s32.totalorder %s119, %s120
      %p134 = scmp.eq.s32.totalorder %s34, 1
      %p135 = por %p133, %p134
      %p137 = scmp.ne.s32.totalorder %s120, %s136
      %p138 = scmp.eq.s32.totalorder %s34, 0
      %p139 = por %p137, %p138
      %s140 = ssub.s32 %s28, %s35
      %p141 = scmp.eq.s32.totalorder %s140, 0
      %s143 = sadd.s32 %s142, 1
      %s144 = scalar_select %p141, %s142, %s143
      %p147 = pneg %p141
      %p148 = scmp.eq.s32.totalorder %s28, 1
      %p149 = por %p147, %p148
      %p150 = scmp.ne.s32.totalorder %s142, %s145
      %p151 = scmp.eq.s32.totalorder %s28, 0
      %p152 = por %p150, %p151
      %p153 = scmp.ne.s32.totalorder %s142, %s145
      %p154 = scmp.eq.s32.totalorder %s33, 1
      %p155 = por %p153, %p154
      %p156 = scmp.ne.s32.totalorder %s145, %s146
      %p157 = scmp.eq.s32.totalorder %s33, 0
      %p158 = por %p156, %p157
      %p159 = scmp.ne.s32.totalorder %s145, %s146
      %p160 = scmp.eq.s32.totalorder %s34, 1
      %p161 = por %p159, %p160
      %p163 = scmp.ne.s32.totalorder %s146, %s162
      %p164 = scmp.eq.s32.totalorder %s34, 0
      %p165 = por %p163, %p164
      %s166 = ssub.s32 %s28, %s35
      %p167 = scmp.eq.s32.totalorder %s166, 0
      %s169 = sadd.s32 %s168, 1
      %s170 = scalar_select %p167, %s168, %s169
      %p173 = pneg %p167
      %p174 = scmp.eq.s32.totalorder %s28, 1
      %p175 = por %p173, %p174
      %p176 = scmp.ne.s32.totalorder %s168, %s171
      %p177 = scmp.eq.s32.totalorder %s28, 0
      %p178 = por %p176, %p177
      %p179 = scmp.ne.s32.totalorder %s168, %s171
      %p180 = scmp.eq.s32.totalorder %s33, 1
      %p181 = por %p179, %p180
      %p182 = scmp.ne.s32.totalorder %s171, %s172
      %p183 = scmp.eq.s32.totalorder %s33, 0
      %p184 = por %p182, %p183
      %p185 = scmp.ne.s32.totalorder %s171, %s172
      %p186 = scmp.eq.s32.totalorder %s34, 1
      %p187 = por %p185, %p186
      %p189 = scmp.ne.s32.totalorder %s172, %s188
      %p190 = scmp.eq.s32.totalorder %s34, 0
      %p191 = por %p189, %p190
      %s192 = ssub.s32 %s28, %s35
      %p193 = scmp.eq.s32.totalorder %s192, 0
      %s195 = sadd.s32 %s194, 1
      %s196 = scalar_select %p193, %s194, %s195
      %p199 = pneg %p193
      %p200 = scmp.eq.s32.totalorder %s28, 1
      %p201 = por %p199, %p200
      %p202 = scmp.ne.s32.totalorder %s194, %s197
      %p203 = scmp.eq.s32.totalorder %s28, 0
      %p204 = por %p202, %p203
      %p205 = scmp.ne.s32.totalorder %s194, %s197
      %p206 = scmp.eq.s32.totalorder %s33, 1
      %p207 = por %p205, %p206
      %p208 = scmp.ne.s32.totalorder %s197, %s198
      %p209 = scmp.eq.s32.totalorder %s33, 0
      %p210 = por %p208, %p209
      %p211 = scmp.ne.s32.totalorder %s197, %s198
      %p212 = scmp.eq.s32.totalorder %s34, 1
      %p213 = por %p211, %p212
      %p215 = scmp.ne.s32.totalorder %s198, %s214
      %p216 = scmp.eq.s32.totalorder %s34, 0
      %p217 = por %p215, %p216
      %s218 = ssub.s32 %s28, %s35
      %p219 = scmp.eq.s32.totalorder %s218, 0
      %s221 = sadd.s32 %s220, 1
      %s222 = scalar_select %p219, %s220, %s221
      %p225 = pneg %p219
      %p226 = scmp.eq.s32.totalorder %s28, 1
      %p227 = por %p225, %p226
      %p228 = scmp.ne.s32.totalorder %s220, %s223
      %p229 = scmp.eq.s32.totalorder %s28, 0
      %p230 = por %p228, %p229
      %p231 = scmp.ne.s32.totalorder %s220, %s223
      %p232 = scmp.eq.s32.totalorder %s33, 1
      %p233 = por %p231, %p232
      %p234 = scmp.ne.s32.totalorder %s223, %s224
      %p235 = scmp.eq.s32.totalorder %s33, 0
      %p236 = por %p234, %p235
      %p237 = scmp.ne.s32.totalorder %s223, %s224
      %p238 = scmp.eq.s32.totalorder %s34, 1
      %p239 = por %p237, %p238
      %p241 = scmp.ne.s32.totalorder %s224, %s240
      %p242 = scmp.eq.s32.totalorder %s34, 0
      %p243 = por %p241, %p242
      %s244 = ssub.s32 %s28, %s35
      %p245 = scmp.eq.s32.totalorder %s244, 0
      %s247 = sadd.s32 %s246, 1
      %s248 = scalar_select %p245, %s246, %s247
      %p251 = pneg %p245
      %p252 = scmp.eq.s32.totalorder %s28, 1
      %p253 = por %p251, %p252
      %p254 = scmp.ne.s32.totalorder %s246, %s249
      %p255 = scmp.eq.s32.totalorder %s28, 0
      %p256 = por %p254, %p255
      %p257 = scmp.ne.s32.totalorder %s246, %s249
      %p258 = scmp.eq.s32.totalorder %s33, 1
      %p259 = por %p257, %p258
      %p260 = scmp.ne.s32.totalorder %s249, %s250
      %p261 = scmp.eq.s32.totalorder %s33, 0
      %p262 = por %p260, %p261
      %p263 = scmp.ne.s32.totalorder %s249, %s250
      %p264 = scmp.eq.s32.totalorder %s34, 1
      %p265 = por %p263, %p264
      %p267 = scmp.ne.s32.totalorder %s250, %s266
      %p268 = scmp.eq.s32.totalorder %s34, 0
      %p269 = por %p267, %p268
      %s270 = ssub.s32 %s28, %s35
      %p271 = scmp.eq.s32.totalorder %s270, 0
      %s273 = sadd.s32 %s272, 1
      %s274 = scalar_select %p271, %s272, %s273
      %p277 = pneg %p271
      %p278 = scmp.eq.s32.totalorder %s28, 1
      %p279 = por %p277, %p278
      %p280 = scmp.ne.s32.totalorder %s272, %s275
      %p281 = scmp.eq.s32.totalorder %s28, 0
      %p282 = por %p280, %p281
      %p283 = scmp.ne.s32.totalorder %s272, %s275
      %p284 = scmp.eq.s32.totalorder %s33, 1
      %p285 = por %p283, %p284
      %p286 = scmp.ne.s32.totalorder %s275, %s276
      %p287 = scmp.eq.s32.totalorder %s33, 0
      %p288 = por %p286, %p287
      %p289 = scmp.ne.s32.totalorder %s275, %s276
      %p290 = scmp.eq.s32.totalorder %s34, 1
      %p291 = por %p289, %p290
      %p293 = scmp.ne.s32.totalorder %s276, %s292
      %p294 = scmp.eq.s32.totalorder %s34, 0
      %p295 = por %p293, %p294
      %s296 = ssub.s32 %s28, %s35
      %p297 = scmp.eq.s32.totalorder %s296, 0
      %s299 = sadd.s32 %s298, 1
      %s300 = scalar_select %p297, %s298, %s299
      %p303 = pneg %p297
      %p304 = scmp.eq.s32.totalorder %s28, 1
      %p305 = por %p303, %p304
      %p306 = scmp.ne.s32.totalorder %s298, %s301
      %p307 = scmp.eq.s32.totalorder %s28, 0
      %p308 = por %p306, %p307
      %p309 = scmp.ne.s32.totalorder %s298, %s301
      %p310 = scmp.eq.s32.totalorder %s33, 1
      %p311 = por %p309, %p310
      %p312 = scmp.ne.s32.totalorder %s301, %s302
      %p313 = scmp.eq.s32.totalorder %s33, 0
      %p314 = por %p312, %p313
      %p315 = scmp.ne.s32.totalorder %s301, %s302
      %p316 = scmp.eq.s32.totalorder %s34, 1
      %p317 = por %p315, %p316
      %p319 = scmp.ne.s32.totalorder %s302, %s318
      %p320 = scmp.eq.s32.totalorder %s34, 0
      %p321 = por %p319, %p320
      %p322 = scmp.le.s32.totalorder 1, %s28
      %p323 = scmp.lt.s32.totalorder %s28, 3
      %p324 = pnand %p322, %p323
      %p325 = pneg %p324
      // Predicated region
      $region9: #{tpu_custom_call.1} parent=5 // pred_check
        _
      $region10: #{tpu_custom_call.1} parent=5 // pred_check_branch
        %327 = sbr.rel (%p324) target = $region12
      $region11: #{tpu_custom_call.1} parent=5 // pred_region
        %s328 = ssub.s32 %s28, 1
      $region12: #{tpu_custom_call.1} parent=5 // pred_fallthru
        _
      %p329 = scmp.lt.s32.totalorder %s28, 2
      // Predicated region
      $region13: #{tpu_custom_call.1} parent=5 // pred_check
        %p330 = pneg %p329
      $region14: #{tpu_custom_call.1} parent=5 // pred_check_branch
        %332 = sbr.rel (%p330) target = $region16
      $region15: #{tpu_custom_call.1} parent=5 // pred_region
        // Predicated region
        $region17: #{tpu_custom_call.1} parent=15 // pred_check
          %p333 = pneg %p48
        $region18: #{tpu_custom_call.1} parent=15 // pred_check_branch
          %335 = sbr.rel (%p333) target = $region20
        $region19: #{tpu_custom_call.1} parent=15 // pred_region
          %s336 = sand.u32 %s38, 1
          %s337 = scalar_lea.sflag [#allocation3], %s336
          %s338 = sand.u32 %s38, 1
          %s339 = smul.addr %s338, 4
          %s340 = scalar_lea.vmem [#allocation2], %s339
          %s342 = ssub.s32 64, 64
          %343 = vsyncadd %s337, %s342
          %s344 = smul.addr %s28, 64
          %s345 = scalar_lea.hbm %s0, %s344
          %s347 = sshll.u32 %s340, 4
          %s348 = int_to_ptr.vmem [resolvable:$true] %s347
          %350 = dma.hbm_to_vmem [thread:$0]  %s345, 64, %s348, %s337
        $region20: #{tpu_custom_call.1} parent=15 // pred_fallthru
          _
        // Predicated region
        $region21: #{tpu_custom_call.1} parent=15 // pred_check
          %p351 = pneg %p74
        $region22: #{tpu_custom_call.1} parent=15 // pred_check_branch
          %353 = sbr.rel (%p351) target = $region24
        $region23: #{tpu_custom_call.1} parent=15 // pred_region
          %s354 = sand.u32 %s28, 1
          %s355 = scalar_lea.sflag [#allocation5], %s354
          %s356 = sand.u32 %s64, 1
          %s357 = smul.addr %s356, 4
          %s358 = scalar_lea.vmem [#allocation4], %s357
          %s360 = ssub.s32 64, 64
          %361 = vsyncadd %s355, %s360
          %s362 = smul.addr %s28, 64
          %s363 = scalar_lea.hbm %s1, %s362
          %s365 = sshll.u32 %s358, 4
          %s366 = int_to_ptr.vmem [resolvable:$true] %s365
          %368 = dma.hbm_to_vmem [thread:$0]  %s363, 64, %s366, %s355
        $region24: #{tpu_custom_call.1} parent=15 // pred_fallthru
          _
        // Predicated region
        $region25: #{tpu_custom_call.1} parent=15 // pred_check
          %p369 = pneg %p100
        $region26: #{tpu_custom_call.1} parent=15 // pred_check_branch
          %371 = sbr.rel (%p369) target = $region28
        $region27: #{tpu_custom_call.1} parent=15 // pred_region
          %s372 = sand.u32 %s28, 1
          %s373 = scalar_lea.sflag [#allocation5], %s372
          %s374 = sand.u32 %s90, 1
          %s375 = smul.addr %s374, 4
          %s376 = scalar_lea.vmem [#allocation6], %s375
          %s378 = ssub.s32 64, 64
          %379 = vsyncadd %s373, %s378
          %s380 = smul.addr %s28, 64
          %s381 = scalar_lea.hbm %s2, %s380
          %s383 = sshll.u32 %s376, 4
          %s384 = int_to_ptr.vmem [resolvable:$true] %s383
          %386 = dma.hbm_to_vmem [thread:$0]  %s381, 64, %s384, %s373
        $region28: #{tpu_custom_call.1} parent=15 // pred_fallthru
          _
        // Predicated region
        $region29: #{tpu_custom_call.1} parent=15 // pred_check
          %p387 = pneg %p126
        $region30: #{tpu_custom_call.1} parent=15 // pred_check_branch
          %389 = sbr.rel (%p387) target = $region32
        $region31: #{tpu_custom_call.1} parent=15 // pred_region
          %p390 = scmp.lt.s32.totalorder %s28, 1
          %s391 = scalar_select %p390, %s28, 1
          %s392 = smul.addr %s391, 4
          %s393 = scalar_lea.vmem %s3, %s392
        $region32: #{tpu_custom_call.1} parent=15 // pred_fallthru
          _
        // Predicated region
        $region33: #{tpu_custom_call.1} parent=15 // pred_check
          %p394 = pneg %p152
        $region34: #{tpu_custom_call.1} parent=15 // pred_check_branch
          %396 = sbr.rel (%p394) target = $region36
        $region35: #{tpu_custom_call.1} parent=15 // pred_region
          %s397 = sand.u32 %s28, 1
          %s398 = scalar_lea.sflag [#allocation8], %s397
          %s399 = sand.u32 %s142, 1
          %s400 = smul.addr %s399, 4
          %s401 = scalar_lea.vmem [#allocation7], %s400
          %s403 = ssub.s32 64, 64
          %404 = vsyncadd %s398, %s403
          %s405 = smul.addr %s28, 64
          %s406 = scalar_lea.hbm %s4, %s405
          %s408 = sshll.u32 %s401, 4
          %s409 = int_to_ptr.vmem [resolvable:$true] %s408
          %411 = dma.hbm_to_vmem [thread:$0]  %s406, 64, %s409, %s398
        $region36: #{tpu_custom_call.1} parent=15 // pred_fallthru
          _
        // Predicated region
        $region37: #{tpu_custom_call.1} parent=15 // pred_check
          %p412 = pneg %p178
        $region38: #{tpu_custom_call.1} parent=15 // pred_check_branch
          %414 = sbr.rel (%p412) target = $region40
        $region39: #{tpu_custom_call.1} parent=15 // pred_region
          %p415 = scmp.lt.s32.totalorder %s28, 1
          %s416 = scalar_select %p415, %s28, 1
          %s417 = smul.addr %s416, 4
          %s418 = scalar_lea.vmem %s5, %s417
        $region40: #{tpu_custom_call.1} parent=15 // pred_fallthru
          _
        // Predicated region
        $region41: #{tpu_custom_call.1} parent=15 // pred_check
          %p419 = pneg %p204
        $region42: #{tpu_custom_call.1} parent=15 // pred_check_branch
          %421 = sbr.rel (%p419) target = $region44
        $region43: #{tpu_custom_call.1} parent=15 // pred_region
          %s422 = sand.u32 %s28, 1
          %s423 = scalar_lea.sflag [#allocation8], %s422
          %s424 = sand.u32 %s194, 1
          %s425 = smul.addr %s424, 4
          %s426 = scalar_lea.vmem [#allocation9], %s425
          %s428 = ssub.s32 64, 64
          %429 = vsyncadd %s423, %s428
          %s430 = smul.addr %s28, 64
          %s431 = scalar_lea.hbm %s6, %s430
          %s433 = sshll.u32 %s426, 4
          %s434 = int_to_ptr.vmem [resolvable:$true] %s433
          %436 = dma.hbm_to_vmem [thread:$0]  %s431, 64, %s434, %s423
        $region44: #{tpu_custom_call.1} parent=15 // pred_fallthru
          _
        // Predicated region
        $region45: #{tpu_custom_call.1} parent=15 // pred_check
          %p437 = pneg %p230
        $region46: #{tpu_custom_call.1} parent=15 // pred_check_branch
          %439 = sbr.rel (%p437) target = $region48
        $region47: #{tpu_custom_call.1} parent=15 // pred_region
          %p440 = scmp.lt.s32.totalorder %s28, 1
          %s441 = scalar_select %p440, %s28, 1
          %s442 = smul.addr %s441, 4
          %s443 = scalar_lea.vmem %s7, %s442
        $region48: #{tpu_custom_call.1} parent=15 // pred_fallthru
          _
        // Predicated region
        $region49: #{tpu_custom_call.1} parent=15 // pred_check
          %p444 = pneg %p256
        $region50: #{tpu_custom_call.1} parent=15 // pred_check_branch
          %446 = sbr.rel (%p444) target = $region52
        $region51: #{tpu_custom_call.1} parent=15 // pred_region
          %s447 = sand.u32 %s246, 1
          %s448 = scalar_lea.sflag [#allocation11], %s447
          %s449 = sand.u32 %s246, 1
          %s450 = smul.addr %s449, 4
          %s451 = scalar_lea.vmem [#allocation10], %s450
          %s453 = ssub.s32 64, 64
          %454 = vsyncadd %s448, %s453
          %s455 = smul.addr %s28, 64
          %s456 = scalar_lea.hbm %s8, %s455
          %s458 = sshll.u32 %s451, 4
          %s459 = int_to_ptr.vmem [resolvable:$true] %s458
          %461 = dma.hbm_to_vmem [thread:$0]  %s456, 64, %s459, %s448
        $region52: #{tpu_custom_call.1} parent=15 // pred_fallthru
          _
        // Predicated region
        $region53: #{tpu_custom_call.1} parent=15 // pred_check
          %p462 = pneg %p282
        $region54: #{tpu_custom_call.1} parent=15 // pred_check_branch
          %464 = sbr.rel (%p462) target = $region56
        $region55: #{tpu_custom_call.1} parent=15 // pred_region
          %p465 = scmp.lt.s32.totalorder %s28, 1
          %s466 = scalar_select %p465, %s28, 1
          %s467 = scalar_lea.vmem %s9, %s466
        $region56: #{tpu_custom_call.1} parent=15 // pred_fallthru
          _
      $region16: #{tpu_custom_call.1} parent=5 // pred_fallthru
        _
      %p468 = scmp.le.s32.totalorder 1, %s28
      %p469 = scmp.lt.s32.totalorder %s28, 3
      %p470 = pnand %p468, %p469
      %p471 = pneg %p470
      // Predicated region
      $region57: #{tpu_custom_call.1} parent=5 // pred_check
        _
      $region58: #{tpu_custom_call.1} parent=5 // pred_check_branch
        %473 = sbr.rel (%p470) target = $region60
      $region59: #{tpu_custom_call.1} parent=5 // pred_region
        %s474 = ssub.s32 %s28, 1
        %s475 = sand.u32 %s41, 1
        %s476 = scalar_lea.sflag [#allocation3], %s475
        %s477 = sand.u32 %s41, 1
        %s478 = smul.addr %s477, 4
        %s479 = scalar_lea.vmem [#allocation2], %s478
        // Predicated region
        $region61: #{tpu_custom_call.1} parent=59 // pred_check
          %p480 = pneg %p54
        $region62: #{tpu_custom_call.1} parent=59 // pred_check_branch
          %482 = sbr.rel (%p480) target = $region64
        $region63: #{tpu_custom_call.1} parent=59 // pred_region
          %483 = dma.done %s476, 64
        $region64: #{tpu_custom_call.1} parent=59 // pred_fallthru
          _
        %s484 = sand.u32 %s33, 1
        %s485 = scalar_lea.sflag [#allocation5], %s484
        %s486 = sand.u32 %s67, 1
        %s487 = smul.addr %s486, 4
        %s488 = scalar_lea.vmem [#allocation4], %s487
        // Predicated region
        $region65: #{tpu_custom_call.1} parent=59 // pred_check
          %p489 = pneg %p80
        $region66: #{tpu_custom_call.1} parent=59 // pred_check_branch
          %491 = sbr.rel (%p489) target = $region68
        $region67: #{tpu_custom_call.1} parent=59 // pred_region
          %492 = dma.done %s485, 64
        $region68: #{tpu_custom_call.1} parent=59 // pred_fallthru
          _
        %s493 = sand.u32 %s33, 1
        %s494 = scalar_lea.sflag [#allocation5], %s493
        %s495 = sand.u32 %s93, 1
        %s496 = smul.addr %s495, 4
        %s497 = scalar_lea.vmem [#allocation6], %s496
        // Predicated region
        $region69: #{tpu_custom_call.1} parent=59 // pred_check
          %p498 = pneg %p106
        $region70: #{tpu_custom_call.1} parent=59 // pred_check_branch
          %500 = sbr.rel (%p498) target = $region72
        $region71: #{tpu_custom_call.1} parent=59 // pred_region
          %501 = dma.done %s494, 64
        $region72: #{tpu_custom_call.1} parent=59 // pred_fallthru
          _
        %s502 = sand.u32 %s33, 1
        %s503 = scalar_lea.sflag [#allocation8], %s502
        %s504 = sand.u32 %s145, 1
        %s505 = smul.addr %s504, 4
        %s506 = scalar_lea.vmem [#allocation7], %s505
        // Predicated region
        $region73: #{tpu_custom_call.1} parent=59 // pred_check
          %p507 = pneg %p158
        $region74: #{tpu_custom_call.1} parent=59 // pred_check_branch
          %509 = sbr.rel (%p507) target = $region76
        $region75: #{tpu_custom_call.1} parent=59 // pred_region
          %510 = dma.done %s503, 64
        $region76: #{tpu_custom_call.1} parent=59 // pred_fallthru
          _
        %s511 = sand.u32 %s33, 1
        %s512 = scalar_lea.sflag [#allocation8], %s511
        %s513 = sand.u32 %s197, 1
        %s514 = smul.addr %s513, 4
        %s515 = scalar_lea.vmem [#allocation9], %s514
        // Predicated region
        $region77: #{tpu_custom_call.1} parent=59 // pred_check
          %p516 = pneg %p210
        $region78: #{tpu_custom_call.1} parent=59 // pred_check_branch
          %518 = sbr.rel (%p516) target = $region80
        $region79: #{tpu_custom_call.1} parent=59 // pred_region
          %519 = dma.done %s512, 64
        $region80: #{tpu_custom_call.1} parent=59 // pred_fallthru
          _
        %s520 = sand.u32 %s249, 1
        %s521 = scalar_lea.sflag [#allocation11], %s520
        %s522 = sand.u32 %s249, 1
        %s523 = smul.addr %s522, 4
        %s524 = scalar_lea.vmem [#allocation10], %s523
        // Predicated region
        $region81: #{tpu_custom_call.1} parent=59 // pred_check
          %p525 = pneg %p262
        $region82: #{tpu_custom_call.1} parent=59 // pred_check_branch
          %527 = sbr.rel (%p525) target = $region84
        $region83: #{tpu_custom_call.1} parent=59 // pred_region
          %528 = dma.done %s521, 64
        $region84: #{tpu_custom_call.1} parent=59 // pred_fallthru
          _
        %s529 = sand.u32 %s41, 1
        %s530 = scalar_lea.sflag [#allocation3], %s529
        %s531 = sand.u32 %s41, 1
        %s532 = smul.addr %s531, 4
        %s533 = scalar_lea.vmem [#allocation2], %s532
        %p534 = pneg %p54
        %p535 = pneg %p51
        %s536 = sand.u32 %s33, 1
        %s537 = scalar_lea.sflag [#allocation5], %s536
        %s538 = sand.u32 %s67, 1
        %s539 = smul.addr %s538, 4
        %s540 = scalar_lea.vmem [#allocation4], %s539
        %p541 = pneg %p80
        %p542 = pneg %p77
        %s543 = sand.u32 %s33, 1
        %s544 = scalar_lea.sflag [#allocation5], %s543
        %s545 = sand.u32 %s93, 1
        %s546 = smul.addr %s545, 4
        %s547 = scalar_lea.vmem [#allocation6], %s546
        %p548 = pneg %p106
        %p549 = pneg %p103
        %p550 = scmp.lt.s32.totalorder %s33, 1
        %s551 = scalar_select %p550, %s33, 1
        %s552 = smul.addr %s551, 4
        %s553 = scalar_lea.vmem %s3, %s552
        %p554 = pneg %p132
        %p555 = pneg %p129
        %s556 = sand.u32 %s33, 1
        %s557 = scalar_lea.sflag [#allocation8], %s556
        %s558 = sand.u32 %s145, 1
        %s559 = smul.addr %s558, 4
        %s560 = scalar_lea.vmem [#allocation7], %s559
        %p561 = pneg %p158
        %p562 = pneg %p155
        %p563 = scmp.lt.s32.totalorder %s33, 1
        %s564 = scalar_select %p563, %s33, 1
        %s565 = smul.addr %s564, 4
        %s566 = scalar_lea.vmem %s5, %s565
        %p567 = pneg %p184
        %p568 = pneg %p181
        %s569 = sand.u32 %s33, 1
        %s570 = scalar_lea.sflag [#allocation8], %s569
        %s571 = sand.u32 %s197, 1
        %s572 = smul.addr %s571, 4
        %s573 = scalar_lea.vmem [#allocation9], %s572
        %p574 = pneg %p210
        %p575 = pneg %p207
        %p576 = scmp.lt.s32.totalorder %s33, 1
        %s577 = scalar_select %p576, %s33, 1
        %s578 = smul.addr %s577, 4
        %s579 = scalar_lea.vmem %s7, %s578
        %p580 = pneg %p236
        %p581 = pneg %p233
        %s582 = sand.u32 %s249, 1
        %s583 = scalar_lea.sflag [#allocation11], %s582
        %s584 = sand.u32 %s249, 1
        %s585 = smul.addr %s584, 4
        %s586 = scalar_lea.vmem [#allocation10], %s585
        %p587 = pneg %p262
        %p588 = pneg %p259
        %p589 = scmp.lt.s32.totalorder %s33, 1
        %s590 = scalar_select %p589, %s33, 1
        %s591 = scalar_lea.vmem %s9, %s590
        %p592 = pneg %p288
        %p593 = pneg %p285
        %p594 = pneg %p314
        %p595 = pneg %p311
        %p596 = scmp.lt.s32.totalorder %s33, 1
        %s597 = scalar_select %p596, %s33, 1
        %s598 = scalar_lea.vmem %s10, %s597
        %p599 = scmp.lt.s32.totalorder %s33, 1
        %s600 = scalar_select %p599, %s33, 1
        %s601 = smul.addr %s600, 4
        %s602 = scalar_lea.vmem %s3, %s601
        %p603 = scmp.lt.s32.totalorder %s33, 1
        %s604 = scalar_select %p603, %s33, 1
        %s605 = smul.addr %s604, 4
        %s606 = scalar_lea.vmem %s5, %s605
        %p607 = scmp.lt.s32.totalorder %s33, 1
        %s608 = scalar_select %p607, %s33, 1
        %s609 = smul.addr %s608, 4
        %s610 = scalar_lea.vmem %s7, %s609
        %p611 = scmp.lt.s32.totalorder %s33, 1
        %s612 = scalar_select %p611, %s33, 1
        %s613 = scalar_lea.vmem %s9, %s612
        %p614 = scmp.lt.s32.totalorder %s33, 1
        %s615 = scalar_select %p614, %s33, 1
        %s616 = scalar_lea.vmem %s10, %s615
        %v617 = vld [vmem:[%s506] sm:$0xf]
        %v618 = vld [vmem:[%s479] sm:$0xf]
        %v619 = vld [vmem:[%s497] sm:$0xf]
        %vm620 = vcmp.gt.f32.partialorder %v619, 0.5
        %v621 = vsub.f32 1.0, %v618
        %v622 = vsel %vm620, %v618, %v621
        %v623 = vlog2.pop %v622
        %v624 = vmul.f32 %v623, 0.6931472
        %v625 = vmax.f32 %v624, -100.0
        %v626 = vsub.f32 0.0, %v625
        %v627 = vld [vmem:[%s488] sm:$0xf]
        %v628 = vld [vmem:[%s602] sm:$0xf]
        %vm629 = vcmp.gt.f32.partialorder %v628, 0.5
        %v630 = vsub.f32 1.0, %v627
        %v631 = vsel %vm629, %v627, %v630
        %v632 = vlog2.pop %v631
        %v633 = vmul.f32 %v632, 0.6931472
        %v634 = vmax.f32 %v633, -100.0
        %v635 = vsub.f32 0.0, %v634
        %v636 = vadd.f32 %v626, %v635
        %v637 = vmul.f32 %v617, %v636
        %v638 = vld [vmem:[%s613] sm:$0x1]
        %v639 = vunpack.c.0.s8 %v638
        %v640 = vcvt.s32.f32 %v639
        %v641 = vld [vmem:[%s606] sm:$0xf]
        %v642 = vld [vmem:[%s610] sm:$0xf]
        %vm643 = vcmp.gt.f32.partialorder %v642, 0.5
        %v644 = vsub.f32 1.0, %v641
        %v645 = vsel %vm643, %v641, %v644
        %v646 = vlog2.pop %v645
        %v647 = vmul.f32 %v646, 0.6931472
        %v648 = vmax.f32 %v647, -100.0
        %v649 = vsub.f32 0.0, %v648
        %v650 = vld [vmem:[%s515] sm:$0xf]
        %v651 = vld [vmem:[%s524] sm:$0xf]
        %vm652 = vcmp.gt.f32.partialorder %v651, 0.5
        %v653 = vsub.f32 1.0, %v650
        %v654 = vsel %vm652, %v650, %v653
        %v655 = vlog2.pop %v654
        %v656 = vmul.f32 %v655, 0.6931472
        %v657 = vmax.f32 %v656, -100.0
        %v658 = vsub.f32 0.0, %v657
        %v659 = vadd.f32 %v649, %v658
        %v660 = vmul.f32 %v640, %v659
        %vm661 = vcmask 125952
        %v662 = vsel %vm661, %v637, 0.0
        %663 = vadd.xlane.f32.xlu0 %v662
        %v664 = vpop.xlane.xlu0 %663
        %vm665 = vcmask 1043456
        %v666 = vsel %vm665, %v664, 0.0
        %v667 = vrot.slane %v666, 4
        %v668 = vadd.f32 %v666, %v667
        %v669 = vrot.slane %v668, 2
        %v670 = vadd.f32 %v668, %v669
        %v671 = vrot.slane %v670, 1
        %v672 = vadd.f32 %v670, %v671
        %vm673 = vcmask 781312
        %v674 = vsel %vm673, %v660, 0.0
        %675 = vadd.xlane.f32.xlu0 %v674
        %v676 = vpop.xlane.xlu0 %675
        %v677 = vsel %vm665, %v676, 0.0
        %v678 = vrot.slane %v677, 4
        %v679 = vadd.f32 %v677, %v678
        %v680 = vrot.slane %v679, 2
        %v681 = vadd.f32 %v679, %v680
        %v682 = vrot.slane %v681, 1
        %v683 = vadd.f32 %v681, %v682
        %v684 = vadd.f32 %v672, %v683
        %vm685 = vcmask 0
        %686 = vst.msk [vmem:[%s616] sm:$0x1] %vm685, %v684
        %p687 = scmp.lt.s32.totalorder %s33, 1
        %s688 = scalar_select %p687, %s33, 1
        %s689 = scalar_lea.vmem %s10, %s688
        // Predicated region
        $region85: #{tpu_custom_call.1} parent=59 // pred_check
          %p690 = pneg %p311
        $region86: #{tpu_custom_call.1} parent=59 // pred_check_branch
          %692 = sbr.rel (%p690) target = $region88
        $region87: #{tpu_custom_call.1} parent=59 // pred_region
          _
        $region88: #{tpu_custom_call.1} parent=59 // pred_fallthru
          _
      $region60: #{tpu_custom_call.1} parent=5 // pred_fallthru
        _
      %p693 = scmp.le.s32.totalorder 2, %s28
      // Predicated region
      $region89: #{tpu_custom_call.1} parent=5 // pred_check
        %p694 = pneg %p693
      $region90: #{tpu_custom_call.1} parent=5 // pred_check_branch
        %696 = sbr.rel (%p694) target = $region92
      $region91: #{tpu_custom_call.1} parent=5 // pred_region
        %s697 = ssub.s32 %s28, 2
        // Predicated region
        $region93: #{tpu_custom_call.1} parent=91 // pred_check
          %p698 = pneg %p317
        $region94: #{tpu_custom_call.1} parent=91 // pred_check_branch
          %700 = sbr.rel (%p698) target = $region96
        $region95: #{tpu_custom_call.1} parent=91 // pred_region
          %p701 = scmp.lt.s32.totalorder %s34, 1
          %s702 = scalar_select %p701, %s34, 1
          %s703 = scalar_lea.vmem %s10, %s702
        $region96: #{tpu_custom_call.1} parent=91 // pred_fallthru
          _
      $region92: #{tpu_custom_call.1} parent=5 // pred_fallthru
        _
    $region6: #{tpu_custom_call.1} parent=1 // loop_footer
      %s32 = sadd.s32 1, %s28
    $region7: #{tpu_custom_call.1} parent=1 // loop_footer_branch
      %27 = sbr.rel target = $region3
    $region8: #{tpu_custom_call.1} parent=1 // loop_exit
      _
    %704 = vsyncpa [#allocation3], 1
    %s705 = scalar_lea.sflag [#allocation3], 1
    %706 = vsyncpa %s705, 1
    %707 = vsyncpa [#allocation5], 1
    %s708 = scalar_lea.sflag [#allocation5], 1
    %709 = vsyncpa %s708, 1
    %710 = vsyncpa [#allocation8], 1
    %s711 = scalar_lea.sflag [#allocation8], 1
    %712 = vsyncpa %s711, 1
    %713 = vsyncpa [#allocation11], 1
    %s714 = scalar_lea.sflag [#allocation11], 1
    %715 = vsyncpa %s714, 1

</llo_original>
